<compile_context>
chip_gen: v5e
topology: v5e:2x2
jax: 0.10.0
libtpu: 0.0.40
codegen_flags: <defaults>
</compile_context>

<pallas_src>
import numpy as np
import jax
import jax.numpy as jnp
from jax.experimental import pallas as pl
from jax.experimental.pallas import tpu as pltpu

# ---------------- small, deterministic configuration ----------------
B = 2               # batch
Z = 32              # latent dim
ZP = 40             # latent dim + ones column, padded to a multiple of 8 (sublane)
C = 3               # image channels
H = W = 16          # synthetic generator output spatial size
CHW = C * H * W     # 768
OUT = 224           # torchvision.transforms.Resize((224, 224))
PAD = 4             # torch.nn.ReflectionPad2d(4)
HP = OUT + 2 * PAD  # 232
K = 10              # synthetic classifier classes
KP = 128            # K padded to a full lane width for a lane-dense output store

IMAGENET_MEAN = np.array([0.485, 0.456, 0.406], np.float32)
IMAGENET_STD = np.array([0.229, 0.224, 0.225], np.float32)


# ---------------- helper matrices (plain numpy glue, computed once) ----------------
def bilinear_matrix(n_in, n_out):
    """Row-stochastic matrix A (n_out, n_in): out = A @ in  (align_corners=False)."""
    A = np.zeros((n_out, n_in), dtype=np.float32)
    scale = n_in / n_out
    for i in range(n_out):
        src = (i + 0.5) * scale - 0.5
        src = min(max(src, 0.0), n_in - 1.0)
        lo = int(np.floor(src))
        hi = min(lo + 1, n_in - 1)
        w = src - lo
        A[i, lo] += 1.0 - w
        A[i, hi] += w
    return A


def reflect_pad_matrix(n, pad):
    """Permutation-like matrix P (n+2p, n) implementing ReflectionPad1d semantics."""
    P = np.zeros((n + 2 * pad, n), dtype=np.float32)
    for i in range(n + 2 * pad):
        j = i - pad
        if j < 0:
            j = -j
        elif j >= n:
            j = 2 * n - 2 - j
        P[i, j] = 1.0
    return P


# ---------------- the single fused Pallas kernel ----------------
def gan_stack_kernel(z_ref, wg_ref, w2_ref, b2_ref, o_ref):
    # gan.generator(z, truncation=1): dense (bias folded into wg via the ones column
    # of z_aug) -> tanh.  bf16 x bf16 MXU dot, f32 accumulate; tanh stays in f32.
    h = jnp.dot(z_ref[...].astype(jnp.bfloat16), wg_ref[...],
                preferred_element_type=jnp.float32)
    t = jnp.tanh(h)                                            # (B, CHW) f32

    # (x+1)/2*256 -> Resize(224, bilinear) -> Normalize(mean, std)
    # -> ReflectionPad2d(4) -> global-average-pool -> linear classifier head:
    # everything is linear in t, folded host-side into one (CHW, KP) weight + bias.
    # TODO(synk): RandomSpatialJitter(8/2), RandomScale, RandomRotation are stochastic
    # augmentations realized at their deterministic identity sample (0 px, 1.0x, 0 deg).
    o_ref[...] = jnp.dot(t.astype(jnp.bfloat16), w2_ref[...],
                         preferred_element_type=jnp.float32) + b2_ref[...]


def gan_stack_forward(z, params):
    # Fold the generator bias into the weight: append a ones column to z and zero-pad
    # the contraction dim to ZP (multiple of 8, sublane-aligned).
    z_aug = jnp.concatenate(
        [z,
         jnp.ones((z.shape[0], 1), z.dtype),
         jnp.zeros((z.shape[0], ZP - Z - 1), z.dtype)], axis=1)

    vmem = pl.BlockSpec(memory_space=pltpu.MemorySpace.VMEM)
    logits_padded = pl.pallas_call(
        gan_stack_kernel,
        out_shape=jax.ShapeDtypeStruct((B, KP), jnp.float32),
        in_specs=[vmem] * 4,
        out_specs=vmem,
    )(z_aug, params["wg_aug"], params["w2"], params["b2"])
    return logits_padded[:, :K]


# ---------------- parameter construction / analytic folding ----------------
def make_params():
    key = jax.random.PRNGKey(0)
    k1, k2, k3, k4 = jax.random.split(key, 4)
    wg = jax.random.normal(k1, (Z, CHW), jnp.float32) * 0.1
    bg = jax.random.normal(k2, (1, CHW), jnp.float32) * 0.01
    wm = jax.random.normal(k3, (C, K), jnp.float32) * 0.1
    bm = jax.random.normal(k4, (1, K), jnp.float32) * 0.01

    wg_np = np.asarray(wg); bg_np = np.asarray(bg)
    wm_np = np.asarray(wm); bm_np = np.asarray(bm)

    # Resize (bilinear, align_corners=False) composed with reflection pad (H == W).
    A = bilinear_matrix(H, OUT)               # (224, 16)
    P = reflect_pad_matrix(OUT, PAD)          # (232, 224)
    R = P @ A                                 # (232, 16) combined per-axis linear map
    v = R.sum(axis=0) / HP                    # (16,)     GAP weights along one axis
    M = np.outer(v, v).astype(np.float32)     # (16, 16): GAP(R @ img @ R.T) = sum(M*img)
    m_flat = M.reshape(-1)                    # (256,)
    m_sum = float(m_flat.sum())               # ~1.0

    # wg_aug: (ZP, CHW) with bg in row Z (activated by the ones column of z_aug).
    wg_aug = np.zeros((ZP, CHW), np.float32)
    wg_aug[:Z] = wg_np
    wg_aug[Z] = bg_np[0]

    # Fold the whole post-tanh linear chain into W2 / b2:
    #   pooled_norm[c] = scale[c]*128*sum_p(M_p * t[c,p]) + scale[c]*128*m_sum + bias[c]
    #   logits[k]      = sum_c wm[c,k]*pooled_norm[c] + bm[k]
    scale = (1.0 / IMAGENET_STD).astype(np.float64)           # 1/std
    bias = (-IMAGENET_MEAN / IMAGENET_STD).astype(np.float64)  # -mean/std
    w2 = np.zeros((CHW, KP), np.float32)
    b2 = np.zeros((1, KP), np.float32)
    for c in range(C):
        w2[c * H * W:(c + 1) * H * W, :K] = (
            128.0 * scale[c] * np.outer(m_flat, wm_np[c])).astype(np.float32)
        b2[0, :K] += ((128.0 * m_sum * scale[c] + bias[c]) * wm_np[c]).astype(np.float32)
    b2[0, :K] += bm_np[0]

    return {
        # kernel parameters (bf16 weights halve the only non-trivial DMA bytes)
        "wg_aug": jnp.asarray(wg_aug, jnp.bfloat16),
        "w2": jnp.asarray(w2, jnp.bfloat16),
        "b2": jnp.asarray(b2, jnp.float32),
        # f32 originals + per-axis matrices for the pure-JAX reference check
        "wg": wg, "bg": bg, "wm": wm, "bm": bm, "A": A, "P": P,
    }


# ---------------- un-collapsed pure-JAX reference (validation only) ----------------
def reference_forward(z, params):
    hp = jax.lax.Precision.HIGHEST
    A = jnp.asarray(params["A"])
    P = jnp.asarray(params["P"])
    mean = jnp.asarray(IMAGENET_MEAN)
    std = jnp.asarray(IMAGENET_STD)

    h = jnp.tanh(jnp.dot(z, params["wg"], precision=hp) + params["bg"])
    x = (h + 1.0) / 2.0 * 256.0
    x = x.reshape(B, C, H, W)
    x = jnp.einsum("oi,bcij->bcoj", A, x, precision=hp)                 # Resize rows
    x = jnp.einsum("bcoj,pj->bcop", x, A, precision=hp)                 # Resize cols
    x = (x - mean[None, :, None, None]) / std[None, :, None, None]      # Normalize
    x = jnp.einsum("oi,bcij->bcoj", P, x, precision=hp)                 # ReflectionPad rows
    x = jnp.einsum("bcoj,pj->bcop", x, P, precision=hp)                 # ReflectionPad cols
    pooled = x.mean(axis=(2, 3))                                        # GAP
    return jnp.dot(pooled, params["wm"], precision=hp) + params["bm"]


if __name__ == "__main__":
    params = make_params()
    z = jax.random.normal(jax.random.PRNGKey(0), (B, Z), jnp.float32)

    logits = gan_stack_forward(z, params)
    jax.block_until_ready(logits)
    assert logits.shape == (B, K)

    # Validate the analytic collapse + folding against the materialized 232x232 pipeline.
    ref = reference_forward(z, params)
    np.testing.assert_allclose(np.asarray(logits), np.asarray(ref), rtol=1e-2, atol=0.5)

    print("KERNEL_OK")
</pallas_src>

<mosaic_0001>
module attributes {stable_mosaic.version = 11 : i64} {
  func.func @gan_stack_kernel(%arg0: memref<2x40xf32, #tpu.memory_space<vmem>>, %arg1: memref<40x768xbf16, #tpu.memory_space<vmem>>, %arg2: memref<768x128xbf16, #tpu.memory_space<vmem>>, %arg3: memref<1x128xf32, #tpu.memory_space<vmem>>, %arg4: memref<2x128xf32, #tpu.memory_space<vmem>>) attributes {dimension_semantics = [], scalar_prefetch = 0 : i64, scratch_operands = 0 : i64, tpu.core_type = #tpu.core_type<tc>} {
    %c0 = arith.constant 0 : index
    %c0_0 = arith.constant 0 : index
    %0 = vector.load %arg0[%c0, %c0_0] : memref<2x40xf32, #tpu.memory_space<vmem>>, vector<2x40xf32>
    %1 = arith.truncf %0 : vector<2x40xf32> to vector<2x40xbf16>
    %c0_1 = arith.constant 0 : index
    %c0_2 = arith.constant 0 : index
    %2 = vector.load %arg1[%c0_1, %c0_2] : memref<40x768xbf16, #tpu.memory_space<vmem>>, vector<40x768xbf16>
    %cst = arith.constant dense<0.000000e+00> : vector<2x768xf32>
    %3 = tpu.matmul %1, %2, %cst {dimension_numbers = #tpu.dot_dimension_numbers<[1], [0], [0], [1], [0, 0, 1, 1], [], []>} : vector<2x40xbf16>, vector<40x768xbf16>, vector<2x768xf32> -> vector<2x768xf32>
    %4 = math.tanh %3 : vector<2x768xf32>
    %5 = arith.truncf %4 : vector<2x768xf32> to vector<2x768xbf16>
    %c0_3 = arith.constant 0 : index
    %c0_4 = arith.constant 0 : index
    %6 = vector.load %arg2[%c0_3, %c0_4] : memref<768x128xbf16, #tpu.memory_space<vmem>>, vector<768x128xbf16>
    %cst_5 = arith.constant dense<0.000000e+00> : vector<2x128xf32>
    %7 = tpu.matmul %5, %6, %cst_5 {dimension_numbers = #tpu.dot_dimension_numbers<[1], [0], [0], [1], [0, 0, 1, 1], [], []>} : vector<2x768xbf16>, vector<768x128xbf16>, vector<2x128xf32> -> vector<2x128xf32>
    %c0_6 = arith.constant 0 : index
    %c0_7 = arith.constant 0 : index
    %8 = vector.load %arg3[%c0_6, %c0_7] : memref<1x128xf32, #tpu.memory_space<vmem>>, vector<1x128xf32>
    %9 = vector.broadcast %8 : vector<1x128xf32> to vector<2x128xf32>
    %10 = arith.addf %7, %9 : vector<2x128xf32>
    %c0_8 = arith.constant 0 : index
    %c0_9 = arith.constant 0 : index
    %11 = vector.load %arg4[%c0_8, %c0_9] : memref<2x128xf32, #tpu.memory_space<vmem>>, vector<2x128xf32>
    tpu.vector_store %arg4[%c0_8, %c0_9], %10 {strides = array<i32>} : memref<2x128xf32, #tpu.memory_space<vmem>>, vector<2x128xf32>,
    return
  }
}

</mosaic_0001>

<llo_original>
// kernel: tpu_custom_call.1
$region0: #{tpu_custom_call.1}
  #allocation0 [shape = 'u32[]', space=smem, size = 0x4, offset = 0x4, fixed_abs, tag = 'smem constant byte address 0x4 - core index']
  #allocation1 [shape = 'u32[72,128]{1,0:T(1,128)}', space=vmem, size = 0x9000, scoped, tag = 'internal scratch']
  %s0 = inlined_call_operand.hbm [shape: f32[2,40], index: 0, kind: input, shape index: {}]
  %s1 = inlined_call_operand.hbm [shape: bf16[40,768], index: 1, kind: input, shape index: {}]
  %s2 = inlined_call_operand.hbm [shape: bf16[768,128], index: 2, kind: input, shape index: {}]
  %s3 = inlined_call_operand.vmem [shape: f32[1,128], index: 3, kind: input, shape index: {}]
  %s4 = inlined_call_operand.hbm [shape: f32[2,128], index: 4, kind: output, shape index: {}]
  %s5 = sld [smem:[#allocation0]]
  $region38: #{tpu_custom_call.1} parent=0
    _
  %s7 = ssub.s32 1, %s5
  %s8 = scalar_select 0, %s7, %s5
  $region1: #{tpu_custom_call.1} parent=0
    #allocation2 [shape = 'u8[1024]{0}', space=vmem, size = 0x400, scoped, tag = 'input window, operand 0, single buffered']
    #allocation3 [shape = 's32[1]{0}', space=sflag, size = 0x4, scoped, tag = 'scoped memory for tpu_custom_call.1']
    #allocation4 [shape = 's32[1]{0}', space=sflag, size = 0x4, scoped, tag = 'scoped memory for tpu_custom_call.1']
    #allocation5 [shape = 'u8[61440]{0}', space=vmem, size = 0xf000, scoped, tag = 'input window, operand 1, single buffered']
    #allocation6 [shape = 's32[1]{0}', space=sflag, size = 0x4, scoped, tag = 'scoped memory for tpu_custom_call.1']
    #allocation7 [shape = 'u8[196608]{0}', space=vmem, size = 0x30000, scoped, tag = 'input window, operand 2, single buffered']
    #allocation8 [shape = 'u8[1024]{0}', space=vmem, size = 0x400, scoped, tag = 'output window, operand 0, single buffered']
    %9 = vsyncpa [#allocation3], 0
    %10 = vsyncpa [#allocation6], 0
    %11 = vsyncpa [#allocation4], 0
    // Predicated region
    $region2: #{tpu_custom_call.1} parent=1 // pred_check
      _
    $region3: #{tpu_custom_call.1} parent=1 // pred_check_branch
      %13 = sbr.rel (0) target = $region5
    $region4: #{tpu_custom_call.1} parent=1 // pred_region
      %15 = vsyncadd [#allocation3], 0
      %s17 = sshll.u32 %s0, 4
      %s18 = int_to_ptr.hbm [resolvable:$true] %s17
      %s19 = sshll.u32 [#allocation2], 4
      %s20 = int_to_ptr.vmem [resolvable:$true] %s19
      %22 = dma.hbm_to_vmem [thread:$0]  %s18, 32, %s20, [#allocation3]
    $region5: #{tpu_custom_call.1} parent=1 // pred_fallthru
      _
    // Predicated region
    $region6: #{tpu_custom_call.1} parent=1 // pred_check
      _
    $region7: #{tpu_custom_call.1} parent=1 // pred_check_branch
      %24 = sbr.rel (0) target = $region9
    $region8: #{tpu_custom_call.1} parent=1 // pred_region
      %26 = vsyncadd [#allocation6], 0
      %s27 = sshll.u32 %s1, 4
      %s28 = int_to_ptr.hbm [resolvable:$true] %s27
      %s29 = sshll.u32 [#allocation5], 4
      %s30 = int_to_ptr.vmem [resolvable:$true] %s29
      %35 = dma.hbm_to_vmem [thread:$0]  %s28, 1920, %s30, [#allocation6], 384, 384, 24
    $region9: #{tpu_custom_call.1} parent=1 // pred_fallthru
      _
    // Predicated region
    $region10: #{tpu_custom_call.1} parent=1 // pred_check
      _
    $region11: #{tpu_custom_call.1} parent=1 // pred_check_branch
      %37 = sbr.rel (0) target = $region13
    $region12: #{tpu_custom_call.1} parent=1 // pred_region
      %39 = vsyncadd [#allocation6], 0
      %s40 = sshll.u32 %s2, 4
      %s41 = int_to_ptr.hbm [resolvable:$true] %s40
      %s42 = sshll.u32 [#allocation7], 4
      %s43 = int_to_ptr.vmem [resolvable:$true] %s42
      %48 = dma.hbm_to_vmem [thread:$0]  %s41, 6144, %s43, [#allocation6], 64, 64, 4
    $region13: #{tpu_custom_call.1} parent=1 // pred_fallthru
      _
    // Predicated region
    $region14: #{tpu_custom_call.1} parent=1 // pred_check
      _
    $region15: #{tpu_custom_call.1} parent=1 // pred_check_branch
      %50 = sbr.rel (0) target = $region17
    $region16: #{tpu_custom_call.1} parent=1 // pred_region
      _
    $region17: #{tpu_custom_call.1} parent=1 // pred_fallthru
      _
    // Predicated region
    $region18: #{tpu_custom_call.1} parent=1 // pred_check
      _
    $region19: #{tpu_custom_call.1} parent=1 // pred_check_branch
      %52 = sbr.rel (0) target = $region21
    $region20: #{tpu_custom_call.1} parent=1 // pred_region
      %54 = dma.done [#allocation3], 32
    $region21: #{tpu_custom_call.1} parent=1 // pred_fallthru
      _
    // Predicated region
    $region22: #{tpu_custom_call.1} parent=1 // pred_check
      _
    $region23: #{tpu_custom_call.1} parent=1 // pred_check_branch
      %56 = sbr.rel (0) target = $region25
    $region24: #{tpu_custom_call.1} parent=1 // pred_region
      %58 = dma.done [#allocation6], 1920
    $region25: #{tpu_custom_call.1} parent=1 // pred_fallthru
      _
    // Predicated region
    $region26: #{tpu_custom_call.1} parent=1 // pred_check
      _
    $region27: #{tpu_custom_call.1} parent=1 // pred_check_branch
      %60 = sbr.rel (0) target = $region29
    $region28: #{tpu_custom_call.1} parent=1 // pred_region
      %62 = dma.done [#allocation6], 6144
    $region29: #{tpu_custom_call.1} parent=1 // pred_fallthru
      _
    %v64 = vld [vmem:[#allocation2] sm:$0x3]
    %v65 = vpack.c.bf16 %v64, %v64
    %v66 = vld [vmem:[#allocation5] sm:$0xff]
    %v67 = vld [vmem:[#allocation5 + $0x8] sm:$0xff]
    %v68 = vld [vmem:[#allocation5 + $0x10] sm:$0xff]
    %v69 = vld [vmem:[#allocation5 + $0x18] sm:$0xff]
    %v70 = vld [vmem:[#allocation5 + $0x20] sm:$0xff]
    %v71 = vld [vmem:[#allocation5 + $0x28] sm:$0xff]
    %v72 = vld [vmem:[#allocation5 + $0x30] sm:$0xff]
    %v73 = vld [vmem:[#allocation5 + $0x38] sm:$0xff]
    %v74 = vld [vmem:[#allocation5 + $0x40] sm:$0xff]
    %v75 = vld [vmem:[#allocation5 + $0x48] sm:$0xff]
    %v76 = vld [vmem:[#allocation5 + $0x50] sm:$0xff]
    %v77 = vld [vmem:[#allocation5 + $0x58] sm:$0xff]
    %v78 = vld [vmem:[#allocation5 + $0x60] sm:$0xff]
    %v79 = vld [vmem:[#allocation5 + $0x68] sm:$0xff]
    %v80 = vld [vmem:[#allocation5 + $0x70] sm:$0xff]
    %v96 = vunpack.c.l.b16 %v66
    %v97 = vunpack.c.h.b16 %v66
    %v98 = vunpack.c.l.b16 %v67
    %v99 = vunpack.c.h.b16 %v67
    %v100 = vunpack.c.l.b16 %v68
    %v101 = vunpack.c.h.b16 %v68
    %v102 = vunpack.c.l.b16 %v69
    %v103 = vunpack.c.h.b16 %v69
    %v104 = vunpack.c.l.b16 %v70
    %v105 = vunpack.c.h.b16 %v70
    %v106 = vunpack.c.l.b16 %v71
    %v107 = vunpack.c.h.b16 %v71
    %v108 = vunpack.c.l.b16 %v72
    %v109 = vunpack.c.h.b16 %v72
    %v110 = vunpack.c.l.b16 %v73
    %v111 = vunpack.c.h.b16 %v73
    %v112 = vunpack.c.l.b16 %v74
    %v113 = vunpack.c.h.b16 %v74
    %v114 = vunpack.c.l.b16 %v75
    %v115 = vunpack.c.h.b16 %v75
    %v116 = vunpack.c.l.b16 %v76
    %v117 = vunpack.c.h.b16 %v76
    %v118 = vunpack.c.l.b16 %v77
    %v119 = vunpack.c.h.b16 %v77
    %v120 = vunpack.c.l.b16 %v78
    %v121 = vunpack.c.h.b16 %v78
    %v122 = vunpack.c.l.b16 %v79
    %v123 = vunpack.c.h.b16 %v79
    %v124 = vunpack.c.l.b16 %v80
    %v125 = vunpack.c.h.b16 %v80
    %v126 = vpack.c.b16 %v102, %v96
    %v127 = vpack.c.b16 %v103, %v97
    %v128 = vpack.c.b16 %v104, %v98
    %v129 = vpack.c.b16 %v105, %v99
    %v130 = vpack.c.b16 %v106, %v100
    %v131 = vpack.c.b16 %v107, %v101
    %v132 = vpack.c.b16 %v114, %v108
    %v133 = vpack.c.b16 %v115, %v109
    %v134 = vpack.c.b16 %v116, %v110
    %v135 = vpack.c.b16 %v117, %v111
    %v136 = vpack.c.b16 %v118, %v112
    %v137 = vpack.c.b16 %v119, %v113
    %v138 = vpack.c.b16 %v120, %v120
    %v139 = vpack.c.b16 %v121, %v121
    %v140 = vpack.c.b16 %v122, %v122
    %v141 = vpack.c.b16 %v123, %v123
    %v142 = vpack.c.b16 %v124, %v124
    %v143 = vpack.c.b16 %v125, %v125
    %vm156 = vcmask 326656
    %v158 = vsel %vm156, %v65, 0
    %vm160 = vcmask 1043456
    %v162 = vsel %vm160, %v138, 0
    %v165 = vsel %vm160, %v139, 0
    %v168 = vsel %vm160, %v140, 0
    %v171 = vsel %vm160, %v141, 0
    %v174 = vsel %vm160, %v142, 0
    %v177 = vsel %vm160, %v143, 0
    %179 = vmatpush.bf16.msra.mxu0 0
    %180 = vmatpush.bf16.msra.mxu0 0
    %181 = vmatpush.bf16.msra.mxu0 0
    %182 = vmatpush.bf16.msra.mxu0 0
    %183 = vmatpush.bf16.msra.mxu0 0
    %184 = vmatpush.bf16.msra.mxu0 %v162
    %185 = vmatpush.bf16.msra.mxu0 %v132
    %186 = vmatpush.bf16.msra.mxu0 %v126
    %187 = vmatmul.bf16.gmra.mxu0 %v158
    %v188 = vpop.f32.mrf.mxu0
    %v189 = vadd.f32 0.0, %v188
    %v190 = vpop.f32.mrf.mxu0
    %191 = vdwg.mxu0
    %192 = vmatpush.bf16.msra.mxu0 0
    %193 = vmatpush.bf16.msra.mxu0 0
    %194 = vmatpush.bf16.msra.mxu0 0
    %195 = vmatpush.bf16.msra.mxu0 0
    %196 = vmatpush.bf16.msra.mxu0 0
    %197 = vmatpush.bf16.msra.mxu0 %v165
    %198 = vmatpush.bf16.msra.mxu0 %v133
    %199 = vmatpush.bf16.msra.mxu0 %v127
    %200 = vmatmul.bf16.gmra.mxu0 %v158
    %v201 = vpop.f32.mrf.mxu0
    %v202 = vadd.f32 0.0, %v201
    %v203 = vpop.f32.mrf.mxu0
    %204 = vdwg.mxu0
    %205 = vmatpush.bf16.msra.mxu0 0
    %206 = vmatpush.bf16.msra.mxu0 0
    %207 = vmatpush.bf16.msra.mxu0 0
    %208 = vmatpush.bf16.msra.mxu0 0
    %209 = vmatpush.bf16.msra.mxu0 0
    %210 = vmatpush.bf16.msra.mxu0 %v168
    %211 = vmatpush.bf16.msra.mxu0 %v134
    %212 = vmatpush.bf16.msra.mxu0 %v128
    %213 = vmatmul.bf16.gmra.mxu0 %v158
    %v214 = vpop.f32.mrf.mxu0
    %v215 = vadd.f32 0.0, %v214
    %v216 = vpop.f32.mrf.mxu0
    %217 = vdwg.mxu0
    %218 = vmatpush.bf16.msra.mxu0 0
    %219 = vmatpush.bf16.msra.mxu0 0
    %220 = vmatpush.bf16.msra.mxu0 0
    %221 = vmatpush.bf16.msra.mxu0 0
    %222 = vmatpush.bf16.msra.mxu0 0
    %223 = vmatpush.bf16.msra.mxu0 %v171
    %224 = vmatpush.bf16.msra.mxu0 %v135
    %225 = vmatpush.bf16.msra.mxu0 %v129
    %226 = vmatmul.bf16.gmra.mxu0 %v158
    %v227 = vpop.f32.mrf.mxu0
    %v228 = vadd.f32 0.0, %v227
    %v229 = vpop.f32.mrf.mxu0
    %230 = vdwg.mxu0
    %231 = vmatpush.bf16.msra.mxu0 0
    %232 = vmatpush.bf16.msra.mxu0 0
    %233 = vmatpush.bf16.msra.mxu0 0
    %234 = vmatpush.bf16.msra.mxu0 0
    %235 = vmatpush.bf16.msra.mxu0 0
    %236 = vmatpush.bf16.msra.mxu0 %v174
    %237 = vmatpush.bf16.msra.mxu0 %v136
    %238 = vmatpush.bf16.msra.mxu0 %v130
    %239 = vmatmul.bf16.gmra.mxu0 %v158
    %v240 = vpop.f32.mrf.mxu0
    %v241 = vadd.f32 0.0, %v240
    %v242 = vpop.f32.mrf.mxu0
    %243 = vdwg.mxu0
    %244 = vmatpush.bf16.msra.mxu0 0
    %245 = vmatpush.bf16.msra.mxu0 0
    %246 = vmatpush.bf16.msra.mxu0 0
    %247 = vmatpush.bf16.msra.mxu0 0
    %248 = vmatpush.bf16.msra.mxu0 0
    %249 = vmatpush.bf16.msra.mxu0 %v177
    %250 = vmatpush.bf16.msra.mxu0 %v137
    %251 = vmatpush.bf16.msra.mxu0 %v131
    %252 = vmatmul.bf16.gmra.mxu0 %v158
    %v253 = vpop.f32.mrf.mxu0
    %v254 = vadd.f32 0.0, %v253
    %v255 = vpop.f32.mrf.mxu0
    %256 = vdwg.mxu0
    %v257 = vtanh.pop %v189
    %v258 = vtanh.pop %v202
    %v259 = vtanh.pop %v215
    %v260 = vtanh.pop %v228
    %v261 = vtanh.pop %v241
    %v262 = vtanh.pop %v254
    %v263 = vpack.c.bf16 %v257, %v257
    %v264 = vpack.c.bf16 %v258, %v258
    %v265 = vpack.c.bf16 %v259, %v259
    %v266 = vpack.c.bf16 %v260, %v260
    %v267 = vpack.c.bf16 %v261, %v261
    %v268 = vpack.c.bf16 %v262, %v262
    %v269 = vld [vmem:[#allocation7] sm:$0xf]
    %v270 = vld [vmem:[#allocation7 + $0x4] sm:$0xf]
    %v271 = vld [vmem:[#allocation7 + $0x8] sm:$0xf]
    %v272 = vld [vmem:[#allocation7 + $0xc] sm:$0xf]
    %v273 = vld [vmem:[#allocation7 + $0x10] sm:$0xf]
    %v274 = vld [vmem:[#allocation7 + $0x14] sm:$0xf]
    %v275 = vld [vmem:[#allocation7 + $0x18] sm:$0xf]
    %v276 = vld [vmem:[#allocation7 + $0x1c] sm:$0xf]
    %v277 = vld [vmem:[#allocation7 + $0x20] sm:$0xf]
    %v278 = vld [vmem:[#allocation7 + $0x24] sm:$0xf]
    %v279 = vld [vmem:[#allocation7 + $0x28] sm:$0xf]
    %v280 = vld [vmem:[#allocation7 + $0x2c] sm:$0xf]
    %v281 = vld [vmem:[#allocation7 + $0x30] sm:$0xf]
    %v282 = vld [vmem:[#allocation7 + $0x34] sm:$0xf]
    %v283 = vld [vmem:[#allocation7 + $0x38] sm:$0xf]
    %v284 = vld [vmem:[#allocation7 + $0x3c] sm:$0xf]
    %v285 = vld [vmem:[#allocation7 + $0x40] sm:$0xf]
    %v286 = vld [vmem:[#allocation7 + $0x44] sm:$0xf]
    %v287 = vld [vmem:[#allocation7 + $0x48] sm:$0xf]
    %v288 = vld [vmem:[#allocation7 + $0x4c] sm:$0xf]
    %v289 = vld [vmem:[#allocation7 + $0x50] sm:$0xf]
    %v290 = vld [vmem:[#allocation7 + $0x54] sm:$0xf]
    %v291 = vld [vmem:[#allocation7 + $0x58] sm:$0xf]
    %v292 = vld [vmem:[#allocation7 + $0x5c] sm:$0xf]
    %v293 = vld [vmem:[#allocation7 + $0x60] sm:$0xf]
    %v294 = vld [vmem:[#allocation7 + $0x64] sm:$0xf]
    %v295 = vld [vmem:[#allocation7 + $0x68] sm:$0xf]
    %v296 = vld [vmem:[#allocation7 + $0x6c] sm:$0xf]
    %v297 = vld [vmem:[#allocation7 + $0x70] sm:$0xf]
    %v298 = vld [vmem:[#allocation7 + $0x74] sm:$0xf]
    %v299 = vld [vmem:[#allocation7 + $0x78] sm:$0xf]
    %v300 = vld [vmem:[#allocation7 + $0x7c] sm:$0xf]
    %v301 = vld [vmem:[#allocation7 + $0x80] sm:$0xf]
    %v302 = vld [vmem:[#allocation7 + $0x84] sm:$0xf]
    %v303 = vld [vmem:[#allocation7 + $0x88] sm:$0xf]
    %v304 = vld [vmem:[#allocation7 + $0x8c] sm:$0xf]
    %v305 = vld [vmem:[#allocation7 + $0x90] sm:$0xf]
    %v306 = vld [vmem:[#allocation7 + $0x94] sm:$0xf]
    %v307 = vld [vmem:[#allocation7 + $0x98] sm:$0xf]
    %v308 = vld [vmem:[#allocation7 + $0x9c] sm:$0xf]
    %v309 = vld [vmem:[#allocation7 + $0xa0] sm:$0xf]
    %v310 = vld [vmem:[#allocation7 + $0xa4] sm:$0xf]
    %v311 = vld [vmem:[#allocation7 + $0xa8] sm:$0xf]
    %v312 = vld [vmem:[#allocation7 + $0xac] sm:$0xf]
    %v313 = vld [vmem:[#allocation7 + $0xb0] sm:$0xf]
    %v314 = vld [vmem:[#allocation7 + $0xb4] sm:$0xf]
    %v315 = vld [vmem:[#allocation7 + $0xb8] sm:$0xf]
    %v316 = vld [vmem:[#allocation7 + $0xbc] sm:$0xf]
    %v317 = vld [vmem:[#allocation7 + $0xc0] sm:$0xf]
    %v318 = vld [vmem:[#allocation7 + $0xc4] sm:$0xf]
    %v319 = vld [vmem:[#allocation7 + $0xc8] sm:$0xf]
    %v320 = vld [vmem:[#allocation7 + $0xcc] sm:$0xf]
    %v321 = vld [vmem:[#allocation7 + $0xd0] sm:$0xf]
    %v322 = vld [vmem:[#allocation7 + $0xd4] sm:$0xf]
    %v323 = vld [vmem:[#allocation7 + $0xd8] sm:$0xf]
    %v324 = vld [vmem:[#allocation7 + $0xdc] sm:$0xf]
    %v325 = vld [vmem:[#allocation7 + $0xe0] sm:$0xf]
    %v326 = vld [vmem:[#allocation7 + $0xe4] sm:$0xf]
    %v327 = vld [vmem:[#allocation7 + $0xe8] sm:$0xf]
    %v328 = vld [vmem:[#allocation7 + $0xec] sm:$0xf]
    %v329 = vld [vmem:[#allocation7 + $0xf0] sm:$0xf]
    %v330 = vld [vmem:[#allocation7 + $0xf4] sm:$0xf]
    %v331 = vld [vmem:[#allocation7 + $0xf8] sm:$0xf]
    %v332 = vld [vmem:[#allocation7 + $0xfc] sm:$0xf]
    %v333 = vld [vmem:[#allocation7 + $0x100] sm:$0xf]
    %v334 = vld [vmem:[#allocation7 + $0x104] sm:$0xf]
    %v335 = vld [vmem:[#allocation7 + $0x108] sm:$0xf]
    %v336 = vld [vmem:[#allocation7 + $0x10c] sm:$0xf]
    %v337 = vld [vmem:[#allocation7 + $0x110] sm:$0xf]
    %v338 = vld [vmem:[#allocation7 + $0x114] sm:$0xf]
    %v339 = vld [vmem:[#allocation7 + $0x118] sm:$0xf]
    %v340 = vld [vmem:[#allocation7 + $0x11c] sm:$0xf]
    %v341 = vld [vmem:[#allocation7 + $0x120] sm:$0xf]
    %v342 = vld [vmem:[#allocation7 + $0x124] sm:$0xf]
    %v343 = vld [vmem:[#allocation7 + $0x128] sm:$0xf]
    %v344 = vld [vmem:[#allocation7 + $0x12c] sm:$0xf]
    %v345 = vld [vmem:[#allocation7 + $0x130] sm:$0xf]
    %v346 = vld [vmem:[#allocation7 + $0x134] sm:$0xf]
    %v347 = vld [vmem:[#allocation7 + $0x138] sm:$0xf]
    %v348 = vld [vmem:[#allocation7 + $0x13c] sm:$0xf]
    %v349 = vld [vmem:[#allocation7 + $0x140] sm:$0xf]
    %v350 = vld [vmem:[#allocation7 + $0x144] sm:$0xf]
    %v351 = vld [vmem:[#allocation7 + $0x148] sm:$0xf]
    %v352 = vld [vmem:[#allocation7 + $0x14c] sm:$0xf]
    %v353 = vld [vmem:[#allocation7 + $0x150] sm:$0xf]
    %v354 = vld [vmem:[#allocation7 + $0x154] sm:$0xf]
    %v355 = vld [vmem:[#allocation7 + $0x158] sm:$0xf]
    %v356 = vld [vmem:[#allocation7 + $0x15c] sm:$0xf]
    %v357 = vld [vmem:[#allocation7 + $0x160] sm:$0xf]
    %v358 = vld [vmem:[#allocation7 + $0x164] sm:$0xf]
    %v359 = vld [vmem:[#allocation7 + $0x168] sm:$0xf]
    %v360 = vld [vmem:[#allocation7 + $0x16c] sm:$0xf]
    %v361 = vld [vmem:[#allocation7 + $0x170] sm:$0xf]
    %v362 = vld [vmem:[#allocation7 + $0x174] sm:$0xf]
    %v363 = vld [vmem:[#allocation7 + $0x178] sm:$0xf]
    %v364 = vld [vmem:[#allocation7 + $0x17c] sm:$0xf]
    %v365 = vld [vmem:[%s3] sm:$0x1]
    %v367 = vperm.slane %v365, 0
    %v465 = vunpack.c.l.b16 %v269
    %v466 = vunpack.c.l.b16 %v270
    %v467 = vunpack.c.l.b16 %v271
    %v468 = vunpack.c.l.b16 %v272
    %v469 = vunpack.c.l.b16 %v273
    %v470 = vunpack.c.l.b16 %v274
    %v471 = vunpack.c.l.b16 %v275
    %v472 = vunpack.c.l.b16 %v276
    %v473 = vunpack.c.l.b16 %v277
    %v474 = vunpack.c.l.b16 %v278
    %v475 = vunpack.c.l.b16 %v279
    %v476 = vunpack.c.l.b16 %v280
    %v477 = vunpack.c.l.b16 %v281
    %v478 = vunpack.c.l.b16 %v282
    %v479 = vunpack.c.l.b16 %v283
    %v480 = vunpack.c.l.b16 %v284
    %v481 = vunpack.c.l.b16 %v285
    %v482 = vunpack.c.l.b16 %v286
    %v483 = vunpack.c.l.b16 %v287
    %v484 = vunpack.c.l.b16 %v288
    %v485 = vunpack.c.l.b16 %v289
    %v486 = vunpack.c.l.b16 %v290
    %v487 = vunpack.c.l.b16 %v291
    %v488 = vunpack.c.l.b16 %v292
    %v489 = vunpack.c.l.b16 %v293
    %v490 = vunpack.c.l.b16 %v294
    %v491 = vunpack.c.l.b16 %v295
    %v492 = vunpack.c.l.b16 %v296
    %v493 = vunpack.c.l.b16 %v297
    %v494 = vunpack.c.l.b16 %v298
    %v495 = vunpack.c.l.b16 %v299
    %v496 = vunpack.c.l.b16 %v300
    %v497 = vunpack.c.l.b16 %v301
    %v498 = vunpack.c.l.b16 %v302
    %v499 = vunpack.c.l.b16 %v303
    %v500 = vunpack.c.l.b16 %v304
    %v501 = vunpack.c.l.b16 %v305
    %v502 = vunpack.c.l.b16 %v306
    %v503 = vunpack.c.l.b16 %v307
    %v504 = vunpack.c.l.b16 %v308
    %v505 = vunpack.c.l.b16 %v309
    %v506 = vunpack.c.l.b16 %v310
    %v507 = vunpack.c.l.b16 %v311
    %v508 = vunpack.c.l.b16 %v312
    %v509 = vunpack.c.l.b16 %v313
    %v510 = vunpack.c.l.b16 %v314
    %v511 = vunpack.c.l.b16 %v315
    %v512 = vunpack.c.l.b16 %v316
    %v513 = vunpack.c.l.b16 %v317
    %v514 = vunpack.c.l.b16 %v318
    %v515 = vunpack.c.l.b16 %v319
    %v516 = vunpack.c.l.b16 %v320
    %v517 = vunpack.c.l.b16 %v321
    %v518 = vunpack.c.l.b16 %v322
    %v519 = vunpack.c.l.b16 %v323
    %v520 = vunpack.c.l.b16 %v324
    %v521 = vunpack.c.l.b16 %v325
    %v522 = vunpack.c.l.b16 %v326
    %v523 = vunpack.c.l.b16 %v327
    %v524 = vunpack.c.l.b16 %v328
    %v525 = vunpack.c.l.b16 %v329
    %v526 = vunpack.c.l.b16 %v330
    %v527 = vunpack.c.l.b16 %v331
    %v528 = vunpack.c.l.b16 %v332
    %v529 = vunpack.c.l.b16 %v333
    %v530 = vunpack.c.l.b16 %v334
    %v531 = vunpack.c.l.b16 %v335
    %v532 = vunpack.c.l.b16 %v336
    %v533 = vunpack.c.l.b16 %v337
    %v534 = vunpack.c.l.b16 %v338
    %v535 = vunpack.c.l.b16 %v339
    %v536 = vunpack.c.l.b16 %v340
    %v537 = vunpack.c.l.b16 %v341
    %v538 = vunpack.c.l.b16 %v342
    %v539 = vunpack.c.l.b16 %v343
    %v540 = vunpack.c.l.b16 %v344
    %v541 = vunpack.c.l.b16 %v345
    %v542 = vunpack.c.l.b16 %v346
    %v543 = vunpack.c.l.b16 %v347
    %v544 = vunpack.c.l.b16 %v348
    %v545 = vunpack.c.l.b16 %v349
    %v546 = vunpack.c.l.b16 %v350
    %v547 = vunpack.c.l.b16 %v351
    %v548 = vunpack.c.l.b16 %v352
    %v549 = vunpack.c.l.b16 %v353
    %v550 = vunpack.c.l.b16 %v354
    %v551 = vunpack.c.l.b16 %v355
    %v552 = vunpack.c.l.b16 %v356
    %v553 = vunpack.c.l.b16 %v357
    %v554 = vunpack.c.l.b16 %v358
    %v555 = vunpack.c.l.b16 %v359
    %v556 = vunpack.c.l.b16 %v360
    %v557 = vunpack.c.l.b16 %v361
    %v558 = vunpack.c.l.b16 %v362
    %v559 = vunpack.c.l.b16 %v363
    %v560 = vunpack.c.l.b16 %v364
    %v561 = vpack.c.b16 %v466, %v465
    %v562 = vpack.c.b16 %v468, %v467
    %v563 = vpack.c.b16 %v470, %v469
    %v564 = vpack.c.b16 %v472, %v471
    %v565 = vpack.c.b16 %v474, %v473
    %v566 = vpack.c.b16 %v476, %v475
    %v567 = vpack.c.b16 %v478, %v477
    %v568 = vpack.c.b16 %v480, %v479
    %v569 = vpack.c.b16 %v482, %v481
    %v570 = vpack.c.b16 %v484, %v483
    %v571 = vpack.c.b16 %v486, %v485
    %v572 = vpack.c.b16 %v488, %v487
    %v573 = vpack.c.b16 %v490, %v489
    %v574 = vpack.c.b16 %v492, %v491
    %v575 = vpack.c.b16 %v494, %v493
    %v576 = vpack.c.b16 %v496, %v495
    %v577 = vpack.c.b16 %v498, %v497
    %v578 = vpack.c.b16 %v500, %v499
    %v579 = vpack.c.b16 %v502, %v501
    %v580 = vpack.c.b16 %v504, %v503
    %v581 = vpack.c.b16 %v506, %v505
    %v582 = vpack.c.b16 %v508, %v507
    %v583 = vpack.c.b16 %v510, %v509
    %v584 = vpack.c.b16 %v512, %v511
    %v585 = vpack.c.b16 %v514, %v513
    %v586 = vpack.c.b16 %v516, %v515
    %v587 = vpack.c.b16 %v518, %v517
    %v588 = vpack.c.b16 %v520, %v519
    %v589 = vpack.c.b16 %v522, %v521
    %v590 = vpack.c.b16 %v524, %v523
    %v591 = vpack.c.b16 %v526, %v525
    %v592 = vpack.c.b16 %v528, %v527
    %v593 = vpack.c.b16 %v530, %v529
    %v594 = vpack.c.b16 %v532, %v531
    %v595 = vpack.c.b16 %v534, %v533
    %v596 = vpack.c.b16 %v536, %v535
    %v597 = vpack.c.b16 %v538, %v537
    %v598 = vpack.c.b16 %v540, %v539
    %v599 = vpack.c.b16 %v542, %v541
    %v600 = vpack.c.b16 %v544, %v543
    %v601 = vpack.c.b16 %v546, %v545
    %v602 = vpack.c.b16 %v548, %v547
    %v603 = vpack.c.b16 %v550, %v549
    %v604 = vpack.c.b16 %v552, %v551
    %v605 = vpack.c.b16 %v554, %v553
    %v606 = vpack.c.b16 %v556, %v555
    %v607 = vpack.c.b16 %v558, %v557
    %v608 = vpack.c.b16 %v560, %v559
    %657 = vmatpush.bf16.msra.mxu0 %v568
    %658 = vmatpush.bf16.msra.mxu0 %v567
    %659 = vmatpush.bf16.msra.mxu0 %v566
    %660 = vmatpush.bf16.msra.mxu0 %v565
    %661 = vmatpush.bf16.msra.mxu0 %v564
    %662 = vmatpush.bf16.msra.mxu0 %v563
    %663 = vmatpush.bf16.msra.mxu0 %v562
    %664 = vmatpush.bf16.msra.mxu0 %v561
    %665 = vmatmul.bf16.gmra.mxu0 %v263
    %v666 = vpop.f32.mrf.mxu0
    %v667 = vadd.f32 %v367, %v666
    %v668 = vpop.f32.mrf.mxu0
    %669 = vdwg.mxu0
    %670 = vmatpush.bf16.msra.mxu0 %v576
    %671 = vmatpush.bf16.msra.mxu0 %v575
    %672 = vmatpush.bf16.msra.mxu0 %v574
    %673 = vmatpush.bf16.msra.mxu0 %v573
    %674 = vmatpush.bf16.msra.mxu0 %v572
    %675 = vmatpush.bf16.msra.mxu0 %v571
    %676 = vmatpush.bf16.msra.mxu0 %v570
    %677 = vmatpush.bf16.msra.mxu0 %v569
    %678 = vmatmul.bf16.gmra.mxu0 %v264
    %v679 = vpop.f32.mrf.mxu0
    %v680 = vadd.f32 %v667, %v679
    %v681 = vpop.f32.mrf.mxu0
    %682 = vdwg.mxu0
    %683 = vmatpush.bf16.msra.mxu0 %v584
    %684 = vmatpush.bf16.msra.mxu0 %v583
    %685 = vmatpush.bf16.msra.mxu0 %v582
    %686 = vmatpush.bf16.msra.mxu0 %v581
    %687 = vmatpush.bf16.msra.mxu0 %v580
    %688 = vmatpush.bf16.msra.mxu0 %v579
    %689 = vmatpush.bf16.msra.mxu0 %v578
    %690 = vmatpush.bf16.msra.mxu0 %v577
    %691 = vmatmul.bf16.gmra.mxu0 %v265
    %v692 = vpop.f32.mrf.mxu0
    %v693 = vadd.f32 %v680, %v692
    %v694 = vpop.f32.mrf.mxu0
    %695 = vdwg.mxu0
    %696 = vmatpush.bf16.msra.mxu0 %v592
    %697 = vmatpush.bf16.msra.mxu0 %v591
    %698 = vmatpush.bf16.msra.mxu0 %v590
    %699 = vmatpush.bf16.msra.mxu0 %v589
    %700 = vmatpush.bf16.msra.mxu0 %v588
    %701 = vmatpush.bf16.msra.mxu0 %v587
    %702 = vmatpush.bf16.msra.mxu0 %v586
    %703 = vmatpush.bf16.msra.mxu0 %v585
    %704 = vmatmul.bf16.gmra.mxu0 %v266
    %v705 = vpop.f32.mrf.mxu0
    %v706 = vadd.f32 %v693, %v705
    %v707 = vpop.f32.mrf.mxu0
    %708 = vdwg.mxu0
    %709 = vmatpush.bf16.msra.mxu0 %v600
    %710 = vmatpush.bf16.msra.mxu0 %v599
    %711 = vmatpush.bf16.msra.mxu0 %v598
    %712 = vmatpush.bf16.msra.mxu0 %v597
    %713 = vmatpush.bf16.msra.mxu0 %v596
    %714 = vmatpush.bf16.msra.mxu0 %v595
    %715 = vmatpush.bf16.msra.mxu0 %v594
    %716 = vmatpush.bf16.msra.mxu0 %v593
    %717 = vmatmul.bf16.gmra.mxu0 %v267
    %v718 = vpop.f32.mrf.mxu0
    %v719 = vadd.f32 %v706, %v718
    %v720 = vpop.f32.mrf.mxu0
    %721 = vdwg.mxu0
    %722 = vmatpush.bf16.msra.mxu0 %v608
    %723 = vmatpush.bf16.msra.mxu0 %v607
    %724 = vmatpush.bf16.msra.mxu0 %v606
    %725 = vmatpush.bf16.msra.mxu0 %v605
    %726 = vmatpush.bf16.msra.mxu0 %v604
    %727 = vmatpush.bf16.msra.mxu0 %v603
    %728 = vmatpush.bf16.msra.mxu0 %v602
    %729 = vmatpush.bf16.msra.mxu0 %v601
    %730 = vmatmul.bf16.gmra.mxu0 %v268
    %v731 = vpop.f32.mrf.mxu0
    %v732 = vadd.f32 %v719, %v731
    %v733 = vpop.f32.mrf.mxu0
    %734 = vdwg.mxu0
    %735 = vst [vmem:[#allocation8] sm:$0x3] %v732
    // Predicated region
    $region30: #{tpu_custom_call.1} parent=1 // pred_check
      _
    $region31: #{tpu_custom_call.1} parent=1 // pred_check_branch
      %737 = sbr.rel (0) target = $region33
    $region32: #{tpu_custom_call.1} parent=1 // pred_region
      %739 = vsyncadd [#allocation4], 0
      %s741 = sshll.u32 [#allocation8], 4
      %s742 = int_to_ptr.vmem [resolvable:$true] %s741
      %s743 = sshll.u32 %s4, 4
      %s744 = int_to_ptr.hbm [resolvable:$true] %s743
      %746 = dma.vmem_to_hbm [thread:$0]  %s742, 32, %s744, [#allocation4]
    $region33: #{tpu_custom_call.1} parent=1 // pred_fallthru
      _
    // Predicated region
    $region34: #{tpu_custom_call.1} parent=1 // pred_check
      _
    $region35: #{tpu_custom_call.1} parent=1 // pred_check_branch
      %748 = sbr.rel (0) target = $region37
    $region36: #{tpu_custom_call.1} parent=1 // pred_region
      %750 = dma.done [#allocation4], 32
    $region37: #{tpu_custom_call.1} parent=1 // pred_fallthru
      _
    %751 = vsyncpa [#allocation3], 1
    %752 = vsyncpa [#allocation6], 1
    %753 = vsyncpa [#allocation4], 1

</llo_original>
